<compile_context>
chip_gen: v7x
topology: tpu7x:2x2x1
jax: 0.10.0
libtpu: 0.0.40
codegen_flags: <defaults>
</compile_context>

<pallas_src>
import jax
import jax.numpy as jnp
from jax.experimental import pallas as pl
from jax.experimental.pallas import tpu as pltpu


_LANE = 128
_TILE_BUDGET_BYTES = 4 * 1024 * 1024   # ~4 MiB/tile -> 16 MiB double-buffered in+out
_VMEM_LIMIT_BYTES = 32 * 1024 * 1024   # safe on v5e/v6e (128 MiB) and v7x (64 MiB)
_SMALL_INPUT_BYTES = 512 * 1024        # below this: single-block fast path


def _udv_diag_kernel(params_ref, x_ref, o_ref):
    x = x_ref[...]
    thr = params_ref[0].astype(x.dtype)
    bnd = params_ref[1].astype(x.dtype)
    o_ref[...] = jnp.where(x < thr, bnd, x)


def _sublane_multiple(itemsize: int) -> int:
    # Native packed sublane tile: 8 for 4-byte, 16 for 2-byte, 32 for 1-byte dtypes.
    return max(8, 32 // max(itemsize, 1))


def _to_2d(x):
    """Reshape to a lane-dense 2-D slab; return (x2d, original_shape)."""
    shape = x.shape
    if x.ndim >= 2 and shape[-1] >= _LANE:
        return x.reshape(-1, shape[-1]), shape
    # 0-D / 1-D / narrow last dim: flatten and pick a wide, divisible column count
    # so row blocks are contiguous in HBM and sublane-dense.
    n = x.size
    flat = x.reshape(n)
    for c in (4096, 2048, 1024, 512, 256, 128):
        if n % c == 0:
            return flat.reshape(n // c, c), shape
    return flat.reshape(1, n), shape


def _choose_tile(R, C, itemsize, sub, budget_bytes):
    """Pick (br, bc) obeying the (8,128)-or-full-dim rule, sized to ~budget_bytes."""
    budget_elems = max(budget_bytes // itemsize, sub * _LANE)
    if R == 1:
        if C <= budget_elems:
            return 1, C
        bc = (budget_elems // _LANE) * _LANE
        return 1, max(min(bc, C), _LANE)
    if sub * C <= budget_elems:
        # Full-width row blocks: contiguous DMA, unmasked lane-dense stores.
        br = (budget_elems // C // sub) * sub
        br = min(br, R)
        return max(br, 1), C
    # Last dim too wide for even `sub` rows at this budget: big 128-multiple lane blocks.
    bc = (budget_elems // sub // _LANE) * _LANE
    bc = max(min(bc, C), _LANE)
    br = R if R <= sub else sub
    return br, bc


def udv_diag(udv_d, threshold=0.0, bound_to=0.0, tile_budget_bytes=_TILE_BUDGET_BYTES):
    """Apply UDV_Diag thresholding: values < threshold become bound_to."""
    if udv_d.size == 0:
        return udv_d

    x2d, orig_shape = _to_2d(udv_d)
    R, C = x2d.shape
    itemsize = x2d.dtype.itemsize
    params = jnp.array([threshold, bound_to], dtype=jnp.float32)

    total_bytes = R * C * itemsize
    if total_bytes <= _SMALL_INPUT_BYTES:
        # Tiny input: one full-array block, no grid, no pipeline overhead.
        out2d = pl.pallas_call(
            _udv_diag_kernel,
            out_shape=jax.ShapeDtypeStruct((R, C), x2d.dtype),
            in_specs=[
                pl.BlockSpec(memory_space=pltpu.MemorySpace.SMEM),
                pl.BlockSpec(memory_space=pltpu.MemorySpace.VMEM),
            ],
            out_specs=pl.BlockSpec(memory_space=pltpu.MemorySpace.VMEM),
            input_output_aliases={1: 0},
            compiler_params=pltpu.CompilerParams(
                vmem_limit_bytes=_VMEM_LIMIT_BYTES),
        )(params, x2d)
        return out2d.reshape(orig_shape)

    sub = _sublane_multiple(itemsize)
    br, bc = _choose_tile(R, C, itemsize, sub, tile_budget_bytes)
    grid = (pl.cdiv(R, br), pl.cdiv(C, bc))

    out2d = pl.pallas_call(
        _udv_diag_kernel,
        out_shape=jax.ShapeDtypeStruct((R, C), x2d.dtype),
        grid=grid,
        in_specs=[
            pl.BlockSpec(memory_space=pltpu.MemorySpace.SMEM),
            pl.BlockSpec((br, bc), lambda i, j: (i, j)),
        ],
        out_specs=pl.BlockSpec((br, bc), lambda i, j: (i, j)),
        input_output_aliases={1: 0},
        compiler_params=pltpu.CompilerParams(
            dimension_semantics=("parallel", "parallel"),
            vmem_limit_bytes=_VMEM_LIMIT_BYTES,
        ),
    )(params, x2d)
    return out2d.reshape(orig_shape)


if __name__ == "__main__":
    key = jax.random.PRNGKey(0)
    k0, k1, k2 = jax.random.split(key, 3)

    def ref_fn(x, thr, bnd):
        return jnp.where(x < thr, jnp.asarray(bnd, x.dtype), x)

    # 1) Small "diagonal values" input (batch of 8 spectra of length 128): fast path.
    x_small = jax.random.normal(k0, (8, 128), dtype=jnp.float32)
    out_small = jax.block_until_ready(udv_diag(x_small, threshold=0.0, bound_to=0.0))
    assert out_small.shape == x_small.shape and out_small.dtype == x_small.dtype
    assert jnp.allclose(out_small, ref_fn(x_small, 0.0, 0.0))

    # 2) Larger input with a small tile budget: exercises the tiled/grid path
    #    (multi-block grid, partial edge blocks, non-zero threshold via SMEM).
    x_big = jax.random.normal(k1, (400, 512), dtype=jnp.float32)
    out_big = jax.block_until_ready(
        udv_diag(x_big, threshold=0.25, bound_to=-1.0, tile_budget_bytes=64 * 1024))
    assert out_big.shape == x_big.shape and out_big.dtype == x_big.dtype
    assert jnp.allclose(out_big, ref_fn(x_big, 0.25, -1.0))

    # 3) 1-D "diagonal" vector: exercises the lane-dense re-layout path.
    x_1d = jax.random.normal(k2, (1024,), dtype=jnp.float32)
    out_1d = jax.block_until_ready(udv_diag(x_1d, threshold=0.1, bound_to=0.0))
    assert out_1d.shape == x_1d.shape and out_1d.dtype == x_1d.dtype
    assert jnp.allclose(out_1d, ref_fn(x_1d, 0.1, 0.0))

    print("KERNEL_OK")
</pallas_src>

<mosaic_0001>
module attributes {stable_mosaic.version = 11 : i64} {
  func.func @_udv_diag_kernel(%arg0: memref<2xf32, #tpu.memory_space<smem>>, %arg1: memref<8x128xf32, #tpu.memory_space<vmem>>, %arg2: memref<8x128xf32, #tpu.memory_space<vmem>>) attributes {dimension_semantics = [], scalar_prefetch = 0 : i64, scratch_operands = 0 : i64, tpu.core_type = #tpu.core_type<tc>} {
    %c0 = arith.constant 0 : index
    %c0_0 = arith.constant 0 : index
    %0 = vector.load %arg1[%c0, %c0_0] : memref<8x128xf32, #tpu.memory_space<vmem>>, vector<8x128xf32>
    %c0_1 = arith.constant 0 : index
    %1 = memref.load %arg0[%c0_1] : memref<2xf32, #tpu.memory_space<smem>>
    %c1 = arith.constant 1 : index
    %2 = memref.load %arg0[%c1] : memref<2xf32, #tpu.memory_space<smem>>
    %3 = vector.broadcast %1 : f32 to vector<8x128xf32>
    %4 = arith.cmpf olt, %0, %3 : vector<8x128xf32>
    %5 = vector.broadcast %2 : f32 to vector<8x128xf32>
    %6 = arith.select %4, %5, %0 : vector<8x128xi1>, vector<8x128xf32>
    %c0_2 = arith.constant 0 : index
    %c0_3 = arith.constant 0 : index
    %7 = vector.load %arg2[%c0_2, %c0_3] : memref<8x128xf32, #tpu.memory_space<vmem>>, vector<8x128xf32>
    tpu.vector_store %arg2[%c0_2, %c0_3], %6 {strides = array<i32>} : memref<8x128xf32, #tpu.memory_space<vmem>>, vector<8x128xf32>,
    return
  }
}

</mosaic_0001>

<llo_original>
// kernel: tpu_custom_call.1
$region0: #{tpu_custom_call.1}
  #allocation0 [shape = 'u32[]', space=smem, size = 0x4, offset = 0x4, fixed_abs, tag = 'smem constant byte address 0x4 - core index']
  #allocation1 [shape = 'u32[144,128]{1,0:T(1,128)}', space=vmem, size = 0x12000, scoped, tag = 'internal scratch']
  %s0 = inlined_call_operand.vmem [shape: f32[2], index: 0, kind: input, shape index: {}]
  %s1 = inlined_call_operand.hbm [shape: f32[8,128], index: 1, kind: input, shape index: {}, may-alias: {1,2}]
  %s2 = inlined_call_operand.hbm [shape: f32[8,128], index: 2, kind: output, shape index: {}, may-alias: {1,2}]
  %s3 = sld [smem:[#allocation0]]
  $region26: #{tpu_custom_call.1} parent=0
    _
  %s5 = ssub.s32 1, %s3
  %s6 = scalar_select 0, %s5, %s3
  $region1: #{tpu_custom_call.1} parent=0
    #allocation2 [shape = 'u8[512]{0}', space=smem, size = 0x200, scoped, tag = 'input window, operand 0, single buffered']
    #allocation3 [shape = 's32[1]{0}', space=sflag, size = 0x4, scoped, tag = 'scoped memory for tpu_custom_call.1']
    #allocation4 [shape = 's32[1]{0}', space=sflag, size = 0x4, scoped, tag = 'scoped memory for tpu_custom_call.1']
    #allocation5 [shape = 's32[1]{0}', space=sflag, size = 0x4, scoped, tag = 'scoped memory for tpu_custom_call.1']
    #allocation6 [shape = 'u8[4096]{0}', space=vmem, size = 0x1000, scoped, tag = 'input window, operand 1, single buffered']
    #allocation7 [shape = 'u8[4096]{0}', space=vmem, size = 0x1000, scoped, tag = 'output window, operand 0, single buffered']
    %7 = vsyncpa [#allocation5], 0
    %8 = vsyncpa [#allocation3], 0
    %9 = vsyncpa [#allocation4], 0
    // Predicated region
    $region2: #{tpu_custom_call.1} parent=1 // pred_check
      _
    $region3: #{tpu_custom_call.1} parent=1 // pred_check_branch
      %11 = sbr.rel (0) target = $region5
    $region4: #{tpu_custom_call.1} parent=1 // pred_region
      %s13 = ssub.s32 16, 16
      %14 = vsyncadd [#allocation5], %s13
      %s16 = sshll.u32 %s0, 4
      %s17 = int_to_ptr.vmem [resolvable:$true] %s16
      %19 = dma.vmem_to_smem %s17, 16, [#allocation2], [#allocation5]
    $region5: #{tpu_custom_call.1} parent=1 // pred_fallthru
      _
    // Predicated region
    $region6: #{tpu_custom_call.1} parent=1 // pred_check
      _
    $region7: #{tpu_custom_call.1} parent=1 // pred_check_branch
      %21 = sbr.rel (0) target = $region9
    $region8: #{tpu_custom_call.1} parent=1 // pred_region
      %s23 = ssub.s32 128, 128
      %24 = vsyncadd [#allocation3], %s23
      %s26 = sshll.u32 [#allocation6], 4
      %s27 = int_to_ptr.vmem [resolvable:$true] %s26
      %29 = dma.hbm_to_vmem [thread:$0]  %s1, 128, %s27, [#allocation3]
    $region9: #{tpu_custom_call.1} parent=1 // pred_fallthru
      _
    // Predicated region
    $region10: #{tpu_custom_call.1} parent=1 // pred_check
      _
    $region11: #{tpu_custom_call.1} parent=1 // pred_check_branch
      %31 = sbr.rel (0) target = $region13
    $region12: #{tpu_custom_call.1} parent=1 // pred_region
      %32 = dma.done [#allocation5], 16
    $region13: #{tpu_custom_call.1} parent=1 // pred_fallthru
      _
    // Predicated region
    $region14: #{tpu_custom_call.1} parent=1 // pred_check
      _
    $region15: #{tpu_custom_call.1} parent=1 // pred_check_branch
      %34 = sbr.rel (0) target = $region17
    $region16: #{tpu_custom_call.1} parent=1 // pred_region
      %35 = dma.done [#allocation3], 128
    $region17: #{tpu_custom_call.1} parent=1 // pred_fallthru
      _
    %36 = sfence
    %v37 = vld [vmem:[#allocation6] sm:$0xff]
    %s38 = sld [smem:[#allocation2]]
    %s39 = sld [smem:[#allocation2 + $0x1]]
    %v40 = vstv %s38
    %vm41 = vcmp.lt.f32.partialorder %v37, %v40
    %v42 = vstv %s39
    %v43 = vsel %vm41, %v42, %v37
    %44 = vst [vmem:[#allocation7] sm:$0xff] %v43
    // Predicated region
    $region18: #{tpu_custom_call.1} parent=1 // pred_check
      _
    $region19: #{tpu_custom_call.1} parent=1 // pred_check_branch
      %46 = sbr.rel (0) target = $region21
    $region20: #{tpu_custom_call.1} parent=1 // pred_region
      %s48 = ssub.s32 128, 128
      %49 = vsyncadd [#allocation4], %s48
      %s51 = sshll.u32 [#allocation7], 4
      %s52 = int_to_ptr.vmem [resolvable:$true] %s51
      %54 = dma.vmem_to_hbm [thread:$0]  %s52, 128, %s2, [#allocation4]
    $region21: #{tpu_custom_call.1} parent=1 // pred_fallthru
      _
    // Predicated region
    $region22: #{tpu_custom_call.1} parent=1 // pred_check
      _
    $region23: #{tpu_custom_call.1} parent=1 // pred_check_branch
      %56 = sbr.rel (0) target = $region25
    $region24: #{tpu_custom_call.1} parent=1 // pred_region
      %57 = dma.done [#allocation4], 128
    $region25: #{tpu_custom_call.1} parent=1 // pred_fallthru
      _
    %58 = vsyncpa [#allocation3], 1
    %59 = vsyncpa [#allocation4], 1
    %60 = vsyncpa [#allocation5], 1

</llo_original>
